<compile_context>
chip_gen: v7x
topology: tpu7x:2x2x1
jax: 0.10.0
libtpu: 0.0.40
codegen_flags: <defaults>
</compile_context>

<pallas_src>
import functools

import jax
import jax.numpy as jnp
from jax import lax
from jax.experimental import pallas as pl
from jax.experimental.pallas import tpu as pltpu


def _round_up(x, m):
    return ((x + m - 1) // m) * m


def _contrastive_pairs_kernel(emb_i_ref, emb_j_ref, lab_i_ref, lab_j_ref, out_ref,
                              *, neg_margin, pos_margin, n_valid, tm, tn):
    i = pl.program_id(0)
    j = pl.program_id(1)

    # Output block (1, 8, 128) stays resident across the column (j) axis: init once.
    @pl.when(j == 0)
    def _():
        out_ref[...] = jnp.zeros_like(out_ref)

    xi = emb_i_ref[...]                       # (TM, Dp) bf16, already L2-normalized
    xj = emb_j_ref[...]                       # (TN, Dp) bf16, already L2-normalized
    # ||x||^2 == 1 by construction, so squared distance is 2 - 2*<xi, xj>.
    gram = lax.dot_general(xi, xj, (((1,), (1,)), ((), ())),
                           preferred_element_type=jnp.float32)   # (TM, TN) f32
    dist = jnp.sqrt(jnp.maximum(2.0 - 2.0 * gram, 0.0))

    # Global row/col indices: exclude self-pairs and padded rows/cols.
    row_g = i * tm + lax.broadcasted_iota(jnp.int32, (tm, tn), 0)
    col_g = j * tn + lax.broadcasted_iota(jnp.int32, (tm, tn), 1)
    valid = jnp.logical_and(row_g < n_valid, col_g < n_valid)
    off_diag = row_g != col_g

    same = lab_i_ref[...] == lab_j_ref[...]   # (TM, 1) == (1, TN) -> (TM, TN)

    # Fused mask + margin + hinge (no separate pos_mask/neg_mask temporaries).
    pos_vals = jnp.where(
        jnp.logical_and(jnp.logical_and(same, off_diag), valid),
        jnp.maximum(dist - pos_margin, 0.0), 0.0)
    neg_vals = jnp.where(
        jnp.logical_and(jnp.logical_not(same), valid),
        jnp.maximum(neg_margin - dist, 0.0), 0.0)

    pos_sum = jnp.sum(pos_vals, keepdims=True)                               # (1, 1)
    neg_sum = jnp.sum(neg_vals, keepdims=True)
    pos_cnt = jnp.sum((pos_vals > 0.0).astype(jnp.float32), keepdims=True)
    neg_cnt = jnp.sum((neg_vals > 0.0).astype(jnp.float32), keepdims=True)

    # Pack the 4 partials into lanes 0..3 of a lane-dense (1, 8, 128) block.
    sub = lax.broadcasted_iota(jnp.int32, (1, 8, 128), 1)
    lane = lax.broadcasted_iota(jnp.int32, (1, 8, 128), 2)
    first = sub == 0
    upd = (jnp.where(jnp.logical_and(first, lane == 0), pos_sum, 0.0)
           + jnp.where(jnp.logical_and(first, lane == 1), neg_sum, 0.0)
           + jnp.where(jnp.logical_and(first, lane == 2), pos_cnt, 0.0)
           + jnp.where(jnp.logical_and(first, lane == 3), neg_cnt, 0.0))
    out_ref[...] += upd


def contrastive_loss(embeddings, labels, *, neg_margin=0.5, pos_margin=0.0):
    """JAX/Pallas equivalent of ContrastiveLoss(margin=0.5).forward(embeddings, labels)."""
    n, d = embeddings.shape

    # Normalize once in the wrapper (EUP rsqrt + multiply), then cast to bf16 for the MXU.
    x = embeddings.astype(jnp.float32)
    sq = jnp.sum(x * x, axis=-1, keepdims=True)
    xn = x * lax.rsqrt(jnp.maximum(sq, 1e-24))

    dp = _round_up(d, 128)
    if n <= 512:
        tm = tn = _round_up(max(n, 1), 128)
        npad = tm
    else:
        tm = tn = 512
        npad = _round_up(n, 512)
    num_i = npad // tm
    num_j = npad // tn

    emb = jnp.zeros((npad, dp), jnp.bfloat16).at[:n, :d].set(xn.astype(jnp.bfloat16))
    lab = jnp.zeros((npad,), jnp.int32).at[:n].set(labels.astype(jnp.int32))
    lab_col = lab.reshape(npad, 1)
    lab_row = lab.reshape(1, npad)

    kernel = functools.partial(
        _contrastive_pairs_kernel,
        neg_margin=float(neg_margin), pos_margin=float(pos_margin),
        n_valid=n, tm=tm, tn=tn)

    partials = pl.pallas_call(
        kernel,
        out_shape=jax.ShapeDtypeStruct((num_i, 8, 128), jnp.float32),
        grid_spec=pltpu.PrefetchScalarGridSpec(
            num_scalar_prefetch=0,
            grid=(num_i, num_j),
            in_specs=[
                pl.BlockSpec((tm, dp), lambda i, j: (i, 0)),   # row-block embeddings
                pl.BlockSpec((tn, dp), lambda i, j: (j, 0)),   # col-block embeddings
                pl.BlockSpec((tm, 1), lambda i, j: (i, 0)),    # row-block labels
                pl.BlockSpec((1, tn), lambda i, j: (0, j)),    # col-block labels
            ],
            out_specs=pl.BlockSpec((1, 8, 128), lambda i, j: (i, 0, 0)),
        ),
        compiler_params=pltpu.CompilerParams(
            dimension_semantics=("parallel", "arbitrary")),
    )(emb, emb, lab_col, lab_row)

    totals = jnp.sum(partials, axis=(0, 1))          # (128,), lanes 0..3 carry data
    pos_sum, neg_sum = totals[0], totals[1]
    pos_cnt, neg_cnt = totals[2], totals[3]
    # AvgNonZeroReducer: mean over strictly-positive losses, 0 if none (done in wrapper).
    pos_avg = jnp.where(pos_cnt > 0.0, pos_sum / jnp.maximum(pos_cnt, 1.0), 0.0)
    neg_avg = jnp.where(neg_cnt > 0.0, neg_sum / jnp.maximum(neg_cnt, 1.0), 0.0)
    return pos_avg + neg_avg


def _reference(embeddings, labels, neg_margin=0.5, pos_margin=0.0):
    x = embeddings / jnp.maximum(
        jnp.linalg.norm(embeddings, axis=1, keepdims=True), 1e-12)
    d = jnp.sqrt(jnp.maximum(
        jnp.sum((x[:, None, :] - x[None, :, :]) ** 2, axis=-1), 0.0))
    same = labels[:, None] == labels[None, :]
    eye = jnp.eye(labels.shape[0], dtype=bool)
    pos_vals = jnp.where(same & ~eye, jnp.maximum(d - pos_margin, 0.0), 0.0)
    neg_vals = jnp.where(~same, jnp.maximum(neg_margin - d, 0.0), 0.0)
    pos_cnt = jnp.sum(pos_vals > 0).astype(jnp.float32)
    neg_cnt = jnp.sum(neg_vals > 0).astype(jnp.float32)
    pos_avg = jnp.where(pos_cnt > 0, jnp.sum(pos_vals) / jnp.maximum(pos_cnt, 1.0), 0.0)
    neg_avg = jnp.where(neg_cnt > 0, jnp.sum(neg_vals) / jnp.maximum(neg_cnt, 1.0), 0.0)
    return pos_avg + neg_avg


if __name__ == "__main__":
    key = jax.random.PRNGKey(0)
    N, D = 8, 32
    embeddings = jax.random.normal(key, (N, D), dtype=jnp.float32)
    labels = jnp.array([0, 0, 1, 1, 2, 2, 0, 1], dtype=jnp.int32)

    loss = contrastive_loss(embeddings, labels, neg_margin=0.5)
    loss = jax.block_until_ready(loss)

    ref = _reference(embeddings, labels, neg_margin=0.5)
    # bf16 MXU operands shift distances at the ~1e-2 level; allow a loose tolerance.
    assert jnp.allclose(loss, ref, atol=3e-2, rtol=3e-2), (loss, ref)

    print("KERNEL_OK")
</pallas_src>

<mosaic_0001>
module attributes {stable_mosaic.version = 11 : i64} {
  func.func @_contrastive_pairs_kernel(%arg0: i32, %arg1: i32, %arg2: memref<128x128xbf16, #tpu.memory_space<vmem>>, %arg3: memref<128x128xbf16, #tpu.memory_space<vmem>>, %arg4: memref<128x1xi32, #tpu.memory_space<vmem>>, %arg5: memref<1x128xi32, #tpu.memory_space<vmem>>, %arg6: memref<1x8x128xf32, #tpu.memory_space<vmem>>) attributes {dimension_semantics = [#tpu.dimension_semantics<parallel>, #tpu.dimension_semantics<arbitrary>], iteration_bounds = array<i64: 1, 1>, scalar_prefetch = 0 : i64, scratch_operands = 0 : i64, tpu.core_type = #tpu.core_type<tc>, window_params = [{transform_indices = @transform_0, window_bounds = array<i64: 128, 128>}, {transform_indices = @transform_1, window_bounds = array<i64: 128, 128>}, {transform_indices = @transform_2, window_bounds = array<i64: 128, 1>}, {transform_indices = @transform_3, window_bounds = array<i64: 1, 128>}, {transform_indices = @transform_4, window_bounds = array<i64: 1, 8, 128>}]} {
    %c0_i32 = arith.constant 0 : i32
    %0 = arith.cmpi eq, %arg1, %c0_i32 : i32
    %1 = arith.extui %0 : i1 to i32
    %c0_i32_0 = arith.constant 0 : i32
    %2 = arith.cmpi ne, %1, %c0_i32_0 : i32
    scf.if %2 {
      %cst_38 = arith.constant 0.000000e+00 : f32
      %114 = vector.broadcast %cst_38 : f32 to vector<1x8x128xf32>
      %c0_39 = arith.constant 0 : index
      %c0_40 = arith.constant 0 : index
      %c0_41 = arith.constant 0 : index
      %115 = vector.load %arg6[%c0_39, %c0_40, %c0_41] : memref<1x8x128xf32, #tpu.memory_space<vmem>>, vector<1x8x128xf32>
      tpu.vector_store %arg6[%c0_39, %c0_40, %c0_41], %114 {strides = array<i32>} : memref<1x8x128xf32, #tpu.memory_space<vmem>>, vector<1x8x128xf32>,
    } else {
    }
    %c0 = arith.constant 0 : index
    %c0_1 = arith.constant 0 : index
    %3 = vector.load %arg2[%c0, %c0_1] : memref<128x128xbf16, #tpu.memory_space<vmem>>, vector<128x128xbf16>
    %c0_2 = arith.constant 0 : index
    %c0_3 = arith.constant 0 : index
    %4 = vector.load %arg3[%c0_2, %c0_3] : memref<128x128xbf16, #tpu.memory_space<vmem>>, vector<128x128xbf16>
    %cst = arith.constant dense<0.000000e+00> : vector<128x128xf32>
    %5 = tpu.matmul %3, %4, %cst {dimension_numbers = #tpu.dot_dimension_numbers<[1], [1], [0], [0], [0, 0, 1, 0], [], []>} : vector<128x128xbf16>, vector<128x128xbf16>, vector<128x128xf32> -> vector<128x128xf32>
    %cst_4 = arith.constant 2.000000e+00 : f32
    %6 = vector.broadcast %cst_4 : f32 to vector<128x128xf32>
    %7 = arith.mulf %6, %5 : vector<128x128xf32>
    %cst_5 = arith.constant 2.000000e+00 : f32
    %8 = vector.broadcast %cst_5 : f32 to vector<128x128xf32>
    %9 = arith.subf %8, %7 : vector<128x128xf32>
    %cst_6 = arith.constant 0.000000e+00 : f32
    %10 = vector.broadcast %cst_6 : f32 to vector<128x128xf32>
    %11 = arith.maximumf %9, %10 : vector<128x128xf32>
    %12 = math.sqrt %11 : vector<128x128xf32>
    %c128_i32 = arith.constant 128 : i32
    %13 = arith.muli %arg0, %c128_i32 : i32
    %14 = tpu.iota {dimensions = array<i32: 0>} : vector<128x128xi32>
    %15 = vector.broadcast %13 : i32 to vector<128x128xi32>
    %16 = arith.addi %15, %14 : vector<128x128xi32>
    %c128_i32_7 = arith.constant 128 : i32
    %17 = arith.muli %arg1, %c128_i32_7 : i32
    %18 = tpu.iota {dimensions = array<i32: 1>} : vector<128x128xi32>
    %19 = vector.broadcast %17 : i32 to vector<128x128xi32>
    %20 = arith.addi %19, %18 : vector<128x128xi32>
    %c8_i32 = arith.constant 8 : i32
    %21 = vector.broadcast %c8_i32 : i32 to vector<128x128xi32>
    %22 = arith.cmpi slt, %16, %21 : vector<128x128xi32>
    %c8_i32_8 = arith.constant 8 : i32
    %23 = vector.broadcast %c8_i32_8 : i32 to vector<128x128xi32>
    %24 = arith.cmpi slt, %20, %23 : vector<128x128xi32>
    %25 = arith.andi %22, %24 : vector<128x128xi1>
    %26 = arith.cmpi ne, %16, %20 : vector<128x128xi32>
    %c0_9 = arith.constant 0 : index
    %c0_10 = arith.constant 0 : index
    %27 = vector.load %arg4[%c0_9, %c0_10] : memref<128x1xi32, #tpu.memory_space<vmem>>, vector<128x1xi32>
    %c0_11 = arith.constant 0 : index
    %c0_12 = arith.constant 0 : index
    %28 = vector.load %arg5[%c0_11, %c0_12] : memref<1x128xi32, #tpu.memory_space<vmem>>, vector<1x128xi32>
    %29 = vector.broadcast %27 : vector<128x1xi32> to vector<128x128xi32>
    %30 = vector.broadcast %28 : vector<1x128xi32> to vector<128x128xi32>
    %31 = arith.cmpi eq, %29, %30 : vector<128x128xi32>
    %32 = arith.andi %31, %26 : vector<128x128xi1>
    %33 = arith.andi %32, %25 : vector<128x128xi1>
    %cst_13 = arith.constant 0.000000e+00 : f32
    %34 = vector.broadcast %cst_13 : f32 to vector<128x128xf32>
    %35 = arith.subf %12, %34 : vector<128x128xf32>
    %cst_14 = arith.constant 0.000000e+00 : f32
    %36 = vector.broadcast %cst_14 : f32 to vector<128x128xf32>
    %37 = arith.maximumf %35, %36 : vector<128x128xf32>
    %cst_15 = arith.constant 0.000000e+00 : f32
    %38 = vector.broadcast %cst_15 : f32 to vector<128x128xf32>
    %39 = arith.select %33, %37, %38 : vector<128x128xi1>, vector<128x128xf32>
    %cst_16 = arith.constant dense<true> : vector<128x128xi1>
    %40 = arith.xori %31, %cst_16 : vector<128x128xi1>
    %41 = arith.andi %40, %25 : vector<128x128xi1>
    %cst_17 = arith.constant 5.000000e-01 : f32
    %42 = vector.broadcast %cst_17 : f32 to vector<128x128xf32>
    %43 = arith.subf %42, %12 : vector<128x128xf32>
    %cst_18 = arith.constant 0.000000e+00 : f32
    %44 = vector.broadcast %cst_18 : f32 to vector<128x128xf32>
    %45 = arith.maximumf %43, %44 : vector<128x128xf32>
    %cst_19 = arith.constant 0.000000e+00 : f32
    %46 = vector.broadcast %cst_19 : f32 to vector<128x128xf32>
    %47 = arith.select %41, %45, %46 : vector<128x128xi1>, vector<128x128xf32>
    %48 = vector.shape_cast %39 : vector<128x128xf32> to vector<1x128x128xf32>
    %cst_20 = arith.constant dense<0.000000e+00> : vector<1xf32>
    %49 = vector.multi_reduction <add>, %48, %cst_20 [1, 2] : vector<1x128x128xf32> to vector<1xf32>
    %50 = vector.shape_cast %49 : vector<1xf32> to vector<1x1x1xf32>
    %51 = vector.extract %50[0, 0, 0] : f32 from vector<1x1x1xf32>
    %52 = vector.broadcast %51 : f32 to vector<1x1xf32>
    %53 = vector.shape_cast %47 : vector<128x128xf32> to vector<1x128x128xf32>
    %cst_21 = arith.constant dense<0.000000e+00> : vector<1xf32>
    %54 = vector.multi_reduction <add>, %53, %cst_21 [1, 2] : vector<1x128x128xf32> to vector<1xf32>
    %55 = vector.shape_cast %54 : vector<1xf32> to vector<1x1x1xf32>
    %56 = vector.extract %55[0, 0, 0] : f32 from vector<1x1x1xf32>
    %57 = vector.broadcast %56 : f32 to vector<1x1xf32>
    %cst_22 = arith.constant 0.000000e+00 : f32
    %58 = vector.broadcast %cst_22 : f32 to vector<128x128xf32>
    %59 = arith.cmpf ogt, %39, %58 : vector<128x128xf32>
    %60 = arith.extui %59 : vector<128x128xi1> to vector<128x128xi32>
    %61 = arith.sitofp %60 : vector<128x128xi32> to vector<128x128xf32>
    %62 = vector.shape_cast %61 : vector<128x128xf32> to vector<1x128x128xf32>
    %cst_23 = arith.constant dense<0.000000e+00> : vector<1xf32>
    %63 = vector.multi_reduction <add>, %62, %cst_23 [1, 2] : vector<1x128x128xf32> to vector<1xf32>
    %64 = vector.shape_cast %63 : vector<1xf32> to vector<1x1x1xf32>
    %65 = vector.extract %64[0, 0, 0] : f32 from vector<1x1x1xf32>
    %66 = vector.broadcast %65 : f32 to vector<1x1xf32>
    %cst_24 = arith.constant 0.000000e+00 : f32
    %67 = vector.broadcast %cst_24 : f32 to vector<128x128xf32>
    %68 = arith.cmpf ogt, %47, %67 : vector<128x128xf32>
    %69 = arith.extui %68 : vector<128x128xi1> to vector<128x128xi32>
    %70 = arith.sitofp %69 : vector<128x128xi32> to vector<128x128xf32>
    %71 = vector.shape_cast %70 : vector<128x128xf32> to vector<1x128x128xf32>
    %cst_25 = arith.constant dense<0.000000e+00> : vector<1xf32>
    %72 = vector.multi_reduction <add>, %71, %cst_25 [1, 2] : vector<1x128x128xf32> to vector<1xf32>
    %73 = vector.shape_cast %72 : vector<1xf32> to vector<1x1x1xf32>
    %74 = vector.extract %73[0, 0, 0] : f32 from vector<1x1x1xf32>
    %75 = vector.broadcast %74 : f32 to vector<1x1xf32>
    %76 = tpu.iota {dimensions = array<i32: 1>} : vector<1x8x128xi32>
    %77 = tpu.iota {dimensions = array<i32: 2>} : vector<1x8x128xi32>
    %c0_i32_26 = arith.constant 0 : i32
    %78 = vector.broadcast %c0_i32_26 : i32 to vector<1x8x128xi32>
    %79 = arith.cmpi eq, %76, %78 : vector<1x8x128xi32>
    %c0_i32_27 = arith.constant 0 : i32
    %80 = vector.broadcast %c0_i32_27 : i32 to vector<1x8x128xi32>
    %81 = arith.cmpi eq, %77, %80 : vector<1x8x128xi32>
    %82 = arith.andi %79, %81 : vector<1x8x128xi1>
    %cst_28 = arith.constant 0.000000e+00 : f32
    %83 = vector.shape_cast %52 : vector<1x1xf32> to vector<1x1x1xf32>
    %84 = vector.broadcast %83 : vector<1x1x1xf32> to vector<1x8x128xf32>
    %85 = vector.broadcast %cst_28 : f32 to vector<1x8x128xf32>
    %86 = arith.select %82, %84, %85 : vector<1x8x128xi1>, vector<1x8x128xf32>
    %c1_i32 = arith.constant 1 : i32
    %87 = vector.broadcast %c1_i32 : i32 to vector<1x8x128xi32>
    %88 = arith.cmpi eq, %77, %87 : vector<1x8x128xi32>
    %89 = arith.andi %79, %88 : vector<1x8x128xi1>
    %cst_29 = arith.constant 0.000000e+00 : f32
    %90 = vector.shape_cast %57 : vector<1x1xf32> to vector<1x1x1xf32>
    %91 = vector.broadcast %90 : vector<1x1x1xf32> to vector<1x8x128xf32>
    %92 = vector.broadcast %cst_29 : f32 to vector<1x8x128xf32>
    %93 = arith.select %89, %91, %92 : vector<1x8x128xi1>, vector<1x8x128xf32>
    %94 = arith.addf %86, %93 : vector<1x8x128xf32>
    %c2_i32 = arith.constant 2 : i32
    %95 = vector.broadcast %c2_i32 : i32 to vector<1x8x128xi32>
    %96 = arith.cmpi eq, %77, %95 : vector<1x8x128xi32>
    %97 = arith.andi %79, %96 : vector<1x8x128xi1>
    %cst_30 = arith.constant 0.000000e+00 : f32
    %98 = vector.shape_cast %66 : vector<1x1xf32> to vector<1x1x1xf32>
    %99 = vector.broadcast %98 : vector<1x1x1xf32> to vector<1x8x128xf32>
    %100 = vector.broadcast %cst_30 : f32 to vector<1x8x128xf32>
    %101 = arith.select %97, %99, %100 : vector<1x8x128xi1>, vector<1x8x128xf32>
    %102 = arith.addf %94, %101 : vector<1x8x128xf32>
    %c3_i32 = arith.constant 3 : i32
    %103 = vector.broadcast %c3_i32 : i32 to vector<1x8x128xi32>
    %104 = arith.cmpi eq, %77, %103 : vector<1x8x128xi32>
    %105 = arith.andi %79, %104 : vector<1x8x128xi1>
    %cst_31 = arith.constant 0.000000e+00 : f32
    %106 = vector.shape_cast %75 : vector<1x1xf32> to vector<1x1x1xf32>
    %107 = vector.broadcast %106 : vector<1x1x1xf32> to vector<1x8x128xf32>
    %108 = vector.broadcast %cst_31 : f32 to vector<1x8x128xf32>
    %109 = arith.select %105, %107, %108 : vector<1x8x128xi1>, vector<1x8x128xf32>
    %110 = arith.addf %102, %109 : vector<1x8x128xf32>
    %c0_32 = arith.constant 0 : index
    %c0_33 = arith.constant 0 : index
    %c0_34 = arith.constant 0 : index
    %111 = vector.load %arg6[%c0_32, %c0_33, %c0_34] : memref<1x8x128xf32, #tpu.memory_space<vmem>>, vector<1x8x128xf32>
    %112 = arith.addf %111, %110 : vector<1x8x128xf32>
    %c0_35 = arith.constant 0 : index
    %c0_36 = arith.constant 0 : index
    %c0_37 = arith.constant 0 : index
    %113 = vector.load %arg6[%c0_35, %c0_36, %c0_37] : memref<1x8x128xf32, #tpu.memory_space<vmem>>, vector<1x8x128xf32>
    tpu.vector_store %arg6[%c0_35, %c0_36, %c0_37], %112 {strides = array<i32>} : memref<1x8x128xf32, #tpu.memory_space<vmem>>, vector<1x8x128xf32>,
    return
  }
  func.func @transform_0(%arg0: i32, %arg1: i32) -> (i32, i32) {
    %c0_i32 = arith.constant 0 : i32
    %c0_i32_0 = arith.constant 0 : i32
    return %arg0, %c0_i32 : i32, i32
  }
  func.func @transform_1(%arg0: i32, %arg1: i32) -> (i32, i32) {
    %c0_i32 = arith.constant 0 : i32
    %c0_i32_0 = arith.constant 0 : i32
    return %arg1, %c0_i32 : i32, i32
  }
  func.func @transform_2(%arg0: i32, %arg1: i32) -> (i32, i32) {
    %c0_i32 = arith.constant 0 : i32
    %c0_i32_0 = arith.constant 0 : i32
    return %arg0, %c0_i32 : i32, i32
  }
  func.func @transform_3(%arg0: i32, %arg1: i32) -> (i32, i32) {
    %c0_i32 = arith.constant 0 : i32
    %c0_i32_0 = arith.constant 0 : i32
    return %c0_i32, %arg1 : i32, i32
  }
  func.func @transform_4(%arg0: i32, %arg1: i32) -> (i32, i32, i32) {
    %c0_i32 = arith.constant 0 : i32
    %c0_i32_0 = arith.constant 0 : i32
    %c0_i32_1 = arith.constant 0 : i32
    return %arg0, %c0_i32, %c0_i32_0 : i32, i32, i32
  }
}

</mosaic_0001>

<llo_original>
// kernel: tpu_custom_call.1
$region0: #{tpu_custom_call.1}
  #allocation0 [shape = 'u32[]', space=smem, size = 0x4, offset = 0x4, fixed_abs, tag = 'smem constant byte address 0x4 - core index']
  #allocation1 [shape = 'u32[144,128]{1,0:T(1,128)}', space=vmem, size = 0x12000, scoped, tag = 'internal scratch']
  %s0 = inlined_call_operand.vmem [shape: bf16[128,128], index: 0, kind: input, shape index: {}]
  %s1 = inlined_call_operand.vmem [shape: bf16[128,128], index: 1, kind: input, shape index: {}]
  %s2 = inlined_call_operand.vmem [shape: s32[128,1], index: 2, kind: input, shape index: {}]
  %s3 = inlined_call_operand.vmem [shape: s32[1,128], index: 3, kind: input, shape index: {}]
  %s4 = inlined_call_operand.hbm [shape: f32[1,8,128], index: 4, kind: output, shape index: {}]
  %s5 = sld [smem:[#allocation0]]
  $region30: #{tpu_custom_call.1} parent=0
    _
  %s7 = ssub.s32 1, %s5
  %s8 = scalar_select 0, %s7, %s5
  $region1: #{tpu_custom_call.1} parent=0
    #allocation2 [shape = 'u8[4096]{0}', space=vmem, size = 0x1000, scoped, tag = 'output window, operand 0, single buffered']
    #allocation3 [shape = 's32[1]{0}', space=sflag, size = 0x4, scoped, tag = 'scoped memory for tpu_custom_call.1']
    %9 = vsyncpa [#allocation3], 0
    // Predicated region
    $region2: #{tpu_custom_call.1} parent=1 // pred_check
      _
    $region3: #{tpu_custom_call.1} parent=1 // pred_check_branch
      %11 = sbr.rel (0) target = $region5
    $region4: #{tpu_custom_call.1} parent=1 // pred_region
      _
    $region5: #{tpu_custom_call.1} parent=1 // pred_fallthru
      _
    // Predicated region
    $region6: #{tpu_custom_call.1} parent=1 // pred_check
      _
    $region7: #{tpu_custom_call.1} parent=1 // pred_check_branch
      %13 = sbr.rel (0) target = $region9
    $region8: #{tpu_custom_call.1} parent=1 // pred_region
      _
    $region9: #{tpu_custom_call.1} parent=1 // pred_fallthru
      _
    // Predicated region
    $region10: #{tpu_custom_call.1} parent=1 // pred_check
      _
    $region11: #{tpu_custom_call.1} parent=1 // pred_check_branch
      %15 = sbr.rel (0) target = $region13
    $region12: #{tpu_custom_call.1} parent=1 // pred_region
      _
    $region13: #{tpu_custom_call.1} parent=1 // pred_fallthru
      _
    // Predicated region
    $region14: #{tpu_custom_call.1} parent=1 // pred_check
      _
    $region15: #{tpu_custom_call.1} parent=1 // pred_check_branch
      %17 = sbr.rel (0) target = $region17
    $region16: #{tpu_custom_call.1} parent=1 // pred_region
      _
    $region17: #{tpu_custom_call.1} parent=1 // pred_fallthru
      _
    %p19 = scmp.eq.s32.totalorder 0, 0
    // Predicated region
    $region18: #{tpu_custom_call.1} parent=1 // pred_check
      %p20 = pneg %p19
    $region19: #{tpu_custom_call.1} parent=1 // pred_check_branch
      %22 = sbr.rel (%p20) target = $region21
    $region20: #{tpu_custom_call.1} parent=1 // pred_region
      %23 = vst [vmem:[#allocation2] sm:$0xff] 0.0
    $region21: #{tpu_custom_call.1} parent=1 // pred_fallthru
      _
    %v24 = vld [vmem:[%s0] sm:$0xf]
    %v25 = vld [vmem:[%s0 + $0x4] sm:$0xf]
    %v26 = vld [vmem:[%s0 + $0x8] sm:$0xf]
    %v27 = vld [vmem:[%s0 + $0xc] sm:$0xf]
    %v28 = vld [vmem:[%s0 + $0x10] sm:$0xf]
    %v29 = vld [vmem:[%s0 + $0x14] sm:$0xf]
    %v30 = vld [vmem:[%s0 + $0x18] sm:$0xf]
    %v31 = vld [vmem:[%s0 + $0x1c] sm:$0xf]
    %v32 = vld [vmem:[%s0 + $0x20] sm:$0xf]
    %v33 = vld [vmem:[%s0 + $0x24] sm:$0xf]
    %v34 = vld [vmem:[%s0 + $0x28] sm:$0xf]
    %v35 = vld [vmem:[%s0 + $0x2c] sm:$0xf]
    %v36 = vld [vmem:[%s0 + $0x30] sm:$0xf]
    %v37 = vld [vmem:[%s0 + $0x34] sm:$0xf]
    %v38 = vld [vmem:[%s0 + $0x38] sm:$0xf]
    %v39 = vld [vmem:[%s0 + $0x3c] sm:$0xf]
    %v40 = vld [vmem:[%s1] sm:$0xf]
    %v41 = vld [vmem:[%s1 + $0x4] sm:$0xf]
    %v42 = vld [vmem:[%s1 + $0x8] sm:$0xf]
    %v43 = vld [vmem:[%s1 + $0xc] sm:$0xf]
    %v44 = vld [vmem:[%s1 + $0x10] sm:$0xf]
    %v45 = vld [vmem:[%s1 + $0x14] sm:$0xf]
    %v46 = vld [vmem:[%s1 + $0x18] sm:$0xf]
    %v47 = vld [vmem:[%s1 + $0x1c] sm:$0xf]
    %v48 = vld [vmem:[%s1 + $0x20] sm:$0xf]
    %v49 = vld [vmem:[%s1 + $0x24] sm:$0xf]
    %v50 = vld [vmem:[%s1 + $0x28] sm:$0xf]
    %v51 = vld [vmem:[%s1 + $0x2c] sm:$0xf]
    %v52 = vld [vmem:[%s1 + $0x30] sm:$0xf]
    %v53 = vld [vmem:[%s1 + $0x34] sm:$0xf]
    %v54 = vld [vmem:[%s1 + $0x38] sm:$0xf]
    %v55 = vld [vmem:[%s1 + $0x3c] sm:$0xf]
    %v72 = vunpack.c.l.b16 %v24
    %v73 = vunpack.c.l.b16 %v25
    %v74 = vunpack.c.l.b16 %v26
    %v75 = vunpack.c.l.b16 %v27
    %v76 = vunpack.c.l.b16 %v28
    %v77 = vunpack.c.l.b16 %v29
    %v78 = vunpack.c.l.b16 %v30
    %v79 = vunpack.c.l.b16 %v31
    %v80 = vunpack.c.l.b16 %v32
    %v81 = vunpack.c.l.b16 %v33
    %v82 = vunpack.c.l.b16 %v34
    %v83 = vunpack.c.l.b16 %v35
    %v84 = vunpack.c.l.b16 %v36
    %v85 = vunpack.c.l.b16 %v37
    %v86 = vunpack.c.l.b16 %v38
    %v87 = vunpack.c.l.b16 %v39
    %v88 = vpack.c.b16 %v73, %v72
    %v89 = vpack.c.b16 %v75, %v74
    %v90 = vpack.c.b16 %v77, %v76
    %v91 = vpack.c.b16 %v79, %v78
    %v92 = vpack.c.b16 %v81, %v80
    %v93 = vpack.c.b16 %v83, %v82
    %v94 = vpack.c.b16 %v85, %v84
    %v95 = vpack.c.b16 %v87, %v86
    %v120 = vunpack.c.l.b16 %v40
    %v121 = vunpack.c.l.b16 %v41
    %v122 = vunpack.c.l.b16 %v42
    %v123 = vunpack.c.l.b16 %v43
    %v124 = vunpack.c.l.b16 %v44
    %v125 = vunpack.c.l.b16 %v45
    %v126 = vunpack.c.l.b16 %v46
    %v127 = vunpack.c.l.b16 %v47
    %v128 = vunpack.c.l.b16 %v48
    %v129 = vunpack.c.l.b16 %v49
    %v130 = vunpack.c.l.b16 %v50
    %v131 = vunpack.c.l.b16 %v51
    %v132 = vunpack.c.l.b16 %v52
    %v133 = vunpack.c.l.b16 %v53
    %v134 = vunpack.c.l.b16 %v54
    %v135 = vunpack.c.l.b16 %v55
    %v136 = vpack.c.b16 %v121, %v120
    %v137 = vpack.c.b16 %v123, %v122
    %v138 = vpack.c.b16 %v125, %v124
    %v139 = vpack.c.b16 %v127, %v126
    %v140 = vpack.c.b16 %v129, %v128
    %v141 = vpack.c.b16 %v131, %v130
    %v142 = vpack.c.b16 %v133, %v132
    %v143 = vpack.c.b16 %v135, %v134
    %152 = vmatprep.subr.bf16.mxu0 0
    %153 = vmatpush1.bf16.xpose.msra.mxu0 %v136
    %154 = vmatprep.subr.bf16.mxu0 0
    %155 = vmatpush1.bf16.xpose.msra.mxu0 %v137
    %156 = vmatprep.subr.bf16.mxu0 0
    %157 = vmatpush1.bf16.xpose.msra.mxu0 %v138
    %158 = vmatprep.subr.bf16.mxu0 0
    %159 = vmatpush1.bf16.xpose.msra.mxu0 %v139
    %160 = vmatprep.subr.bf16.mxu0 0
    %161 = vmatpush1.bf16.xpose.msra.mxu0 %v140
    %162 = vmatprep.subr.bf16.mxu0 0
    %163 = vmatpush1.bf16.xpose.msra.mxu0 %v141
    %164 = vmatprep.subr.bf16.mxu0 0
    %165 = vmatpush1.bf16.xpose.msra.mxu0 %v142
    %166 = vmatprep.subr.bf16.mxu0 0
    %167 = vmatpush1.bf16.xpose.msra.mxu0 %v143
    %168 = vmatprep.subr.bf16.mxu0 0
    %169 = vmatpush1.bf16.xpose.msra.mxu0 0
    %170 = vmatprep.subr.bf16.mxu0 0
    %171 = vmatpush1.bf16.xpose.msra.mxu0 0
    %172 = vmatprep.subr.bf16.mxu0 0
    %173 = vmatpush1.bf16.xpose.msra.mxu0 0
    %174 = vmatprep.subr.bf16.mxu0 0
    %175 = vmatpush1.bf16.xpose.msra.mxu0 0
    %176 = vmatprep.subr.bf16.mxu0 0
    %177 = vmatpush1.bf16.xpose.msra.mxu0 0
    %178 = vmatprep.subr.bf16.mxu0 0
    %179 = vmatpush1.bf16.xpose.msra.mxu0 0
    %180 = vmatprep.subr.bf16.mxu0 0
    %181 = vmatpush1.bf16.xpose.msra.mxu0 0
    %182 = vmatprep.subr.bf16.mxu0 0
    %183 = vmatpush1.bf16.xpose.msra.mxu0 0
    %184 = vmatprep.mubr.bf16.mxu0 0
    %185 = vmatmul.mubr.bf16.gmra.mrb[0].mxu0 %v88
    %v186 = vpop.f32.mrb[0].mxu0
    %v187 = vadd.f32 0.0, %v186
    %v188 = vpop.f32.mrb[0].mxu0
    %v189 = vpop.f32.mrb[0].mxu0
    %v190 = vadd.f32 0.0, %v189
    %v191 = vpop.f32.mrb[0].mxu0
    %192 = vmatprep.mubr.bf16.mxu0 0
    %193 = vmatmul.mubr.bf16.gmra.mrb[0].mxu0 %v89
    %v194 = vpop.f32.mrb[0].mxu0
    %v195 = vadd.f32 0.0, %v194
    %v196 = vpop.f32.mrb[0].mxu0
    %v197 = vpop.f32.mrb[0].mxu0
    %v198 = vadd.f32 0.0, %v197
    %v199 = vpop.f32.mrb[0].mxu0
    %200 = vmatprep.mubr.bf16.mxu0 0
    %201 = vmatmul.mubr.bf16.gmra.mrb[0].mxu0 %v90
    %v202 = vpop.f32.mrb[0].mxu0
    %v203 = vadd.f32 0.0, %v202
    %v204 = vpop.f32.mrb[0].mxu0
    %v205 = vpop.f32.mrb[0].mxu0
    %v206 = vadd.f32 0.0, %v205
    %v207 = vpop.f32.mrb[0].mxu0
    %208 = vmatprep.mubr.bf16.mxu0 0
    %209 = vmatmul.mubr.bf16.gmra.mrb[0].mxu0 %v91
    %v210 = vpop.f32.mrb[0].mxu0
    %v211 = vadd.f32 0.0, %v210
    %v212 = vpop.f32.mrb[0].mxu0
    %v213 = vpop.f32.mrb[0].mxu0
    %v214 = vadd.f32 0.0, %v213
    %v215 = vpop.f32.mrb[0].mxu0
    %216 = vmatprep.mubr.bf16.mxu0 0
    %217 = vmatmul.mubr.bf16.gmra.mrb[0].mxu0 %v92
    %v218 = vpop.f32.mrb[0].mxu0
    %v219 = vadd.f32 0.0, %v218
    %v220 = vpop.f32.mrb[0].mxu0
    %v221 = vpop.f32.mrb[0].mxu0
    %v222 = vadd.f32 0.0, %v221
    %v223 = vpop.f32.mrb[0].mxu0
    %224 = vmatprep.mubr.bf16.mxu0 0
    %225 = vmatmul.mubr.bf16.gmra.mrb[0].mxu0 %v93
    %v226 = vpop.f32.mrb[0].mxu0
    %v227 = vadd.f32 0.0, %v226
    %v228 = vpop.f32.mrb[0].mxu0
    %v229 = vpop.f32.mrb[0].mxu0
    %v230 = vadd.f32 0.0, %v229
    %v231 = vpop.f32.mrb[0].mxu0
    %232 = vmatprep.mubr.bf16.mxu0 0
    %233 = vmatmul.mubr.bf16.gmra.mrb[0].mxu0 %v94
    %v234 = vpop.f32.mrb[0].mxu0
    %v235 = vadd.f32 0.0, %v234
    %v236 = vpop.f32.mrb[0].mxu0
    %v237 = vpop.f32.mrb[0].mxu0
    %v238 = vadd.f32 0.0, %v237
    %v239 = vpop.f32.mrb[0].mxu0
    %240 = vmatprep.mubr.bf16.mxu0 0
    %241 = vmatmul.mubr.bf16.gmra.mrb[0].mxu0 %v95
    %v242 = vpop.f32.mrb[0].mxu0
    %v243 = vadd.f32 0.0, %v242
    %v244 = vpop.f32.mrb[0].mxu0
    %v245 = vpop.f32.mrb[0].mxu0
    %v246 = vadd.f32 0.0, %v245
    %v247 = vpop.f32.mrb[0].mxu0
    %248 = vdwg.mxu0
    %v249 = vmul.f32 %v187, 2.0
    %v250 = vmul.f32 %v190, 2.0
    %v251 = vmul.f32 %v195, 2.0
    %v252 = vmul.f32 %v198, 2.0
    %v253 = vmul.f32 %v203, 2.0
    %v254 = vmul.f32 %v206, 2.0
    %v255 = vmul.f32 %v211, 2.0
    %v256 = vmul.f32 %v214, 2.0
    %v257 = vmul.f32 %v219, 2.0
    %v258 = vmul.f32 %v222, 2.0
    %v259 = vmul.f32 %v227, 2.0
    %v260 = vmul.f32 %v230, 2.0
    %v261 = vmul.f32 %v235, 2.0
    %v262 = vmul.f32 %v238, 2.0
    %v263 = vmul.f32 %v243, 2.0
    %v264 = vmul.f32 %v246, 2.0
    %v265 = vsub.f32 2.0, %v249
    %v266 = vsub.f32 2.0, %v250
    %v267 = vsub.f32 2.0, %v251
    %v268 = vsub.f32 2.0, %v252
    %v269 = vsub.f32 2.0, %v253
    %v270 = vsub.f32 2.0, %v254
    %v271 = vsub.f32 2.0, %v255
    %v272 = vsub.f32 2.0, %v256
    %v273 = vsub.f32 2.0, %v257
    %v274 = vsub.f32 2.0, %v258
    %v275 = vsub.f32 2.0, %v259
    %v276 = vsub.f32 2.0, %v260
    %v277 = vsub.f32 2.0, %v261
    %v278 = vsub.f32 2.0, %v262
    %v279 = vsub.f32 2.0, %v263
    %v280 = vsub.f32 2.0, %v264
    %v281 = vmax.f32 %v265, 0.0
    %v282 = vmax.f32 %v266, 0.0
    %v283 = vmax.f32 %v267, 0.0
    %v284 = vmax.f32 %v268, 0.0
    %v285 = vmax.f32 %v269, 0.0
    %v286 = vmax.f32 %v270, 0.0
    %v287 = vmax.f32 %v271, 0.0
    %v288 = vmax.f32 %v272, 0.0
    %v289 = vmax.f32 %v273, 0.0
    %v290 = vmax.f32 %v274, 0.0
    %v291 = vmax.f32 %v275, 0.0
    %v292 = vmax.f32 %v276, 0.0
    %v293 = vmax.f32 %v277, 0.0
    %v294 = vmax.f32 %v278, 0.0
    %v295 = vmax.f32 %v279, 0.0
    %v296 = vmax.f32 %v280, 0.0
    %v297 = vrsqrt.pop %v281
    %v298 = vmul.f32 %v281, %v297
    %vm299 = vcmp.eq.f32.partialorder %v281, inf
    %v300 = vsel %vm299, %v281, %v298
    %vm301 = vcmp.eq.f32.partialorder %v281, 0.0
    %v302 = vand.u32 %v281, 2147483648
    %v303 = vsel %vm301, %v302, %v300
    %v304 = vrsqrt.pop %v282
    %v305 = vmul.f32 %v282, %v304
    %vm306 = vcmp.eq.f32.partialorder %v282, inf
    %v307 = vsel %vm306, %v282, %v305
    %vm308 = vcmp.eq.f32.partialorder %v282, 0.0
    %v309 = vand.u32 %v282, 2147483648
    %v310 = vsel %vm308, %v309, %v307
    %v311 = vrsqrt.pop %v283
    %v312 = vmul.f32 %v283, %v311
    %vm313 = vcmp.eq.f32.partialorder %v283, inf
    %v314 = vsel %vm313, %v283, %v312
    %vm315 = vcmp.eq.f32.partialorder %v283, 0.0
    %v316 = vand.u32 %v283, 2147483648
    %v317 = vsel %vm315, %v316, %v314
    %v318 = vrsqrt.pop %v284
    %v319 = vmul.f32 %v284, %v318
    %vm320 = vcmp.eq.f32.partialorder %v284, inf
    %v321 = vsel %vm320, %v284, %v319
    %vm322 = vcmp.eq.f32.partialorder %v284, 0.0
    %v323 = vand.u32 %v284, 2147483648
    %v324 = vsel %vm322, %v323, %v321
    %v325 = vrsqrt.pop %v285
    %v326 = vmul.f32 %v285, %v325
    %vm327 = vcmp.eq.f32.partialorder %v285, inf
    %v328 = vsel %vm327, %v285, %v326
    %vm329 = vcmp.eq.f32.partialorder %v285, 0.0
    %v330 = vand.u32 %v285, 2147483648
    %v331 = vsel %vm329, %v330, %v328
    %v332 = vrsqrt.pop %v286
    %v333 = vmul.f32 %v286, %v332
    %vm334 = vcmp.eq.f32.partialorder %v286, inf
    %v335 = vsel %vm334, %v286, %v333
    %vm336 = vcmp.eq.f32.partialorder %v286, 0.0
    %v337 = vand.u32 %v286, 2147483648
    %v338 = vsel %vm336, %v337, %v335
    %v339 = vrsqrt.pop %v287
    %v340 = vmul.f32 %v287, %v339
    %vm341 = vcmp.eq.f32.partialorder %v287, inf
    %v342 = vsel %vm341, %v287, %v340
    %vm343 = vcmp.eq.f32.partialorder %v287, 0.0
    %v344 = vand.u32 %v287, 2147483648
    %v345 = vsel %vm343, %v344, %v342
    %v346 = vrsqrt.pop %v288
    %v347 = vmul.f32 %v288, %v346
    %vm348 = vcmp.eq.f32.partialorder %v288, inf
    %v349 = vsel %vm348, %v288, %v347
    %vm350 = vcmp.eq.f32.partialorder %v288, 0.0
    %v351 = vand.u32 %v288, 2147483648
    %v352 = vsel %vm350, %v351, %v349
    %v353 = vrsqrt.pop %v289
    %v354 = vmul.f32 %v289, %v353
    %vm355 = vcmp.eq.f32.partialorder %v289, inf
    %v356 = vsel %vm355, %v289, %v354
    %vm357 = vcmp.eq.f32.partialorder %v289, 0.0
    %v358 = vand.u32 %v289, 2147483648
    %v359 = vsel %vm357, %v358, %v356
    %v360 = vrsqrt.pop %v290
    %v361 = vmul.f32 %v290, %v360
    %vm362 = vcmp.eq.f32.partialorder %v290, inf
    %v363 = vsel %vm362, %v290, %v361
    %vm364 = vcmp.eq.f32.partialorder %v290, 0.0
    %v365 = vand.u32 %v290, 2147483648
    %v366 = vsel %vm364, %v365, %v363
    %v367 = vrsqrt.pop %v291
    %v368 = vmul.f32 %v291, %v367
    %vm369 = vcmp.eq.f32.partialorder %v291, inf
    %v370 = vsel %vm369, %v291, %v368
    %vm371 = vcmp.eq.f32.partialorder %v291, 0.0
    %v372 = vand.u32 %v291, 2147483648
    %v373 = vsel %vm371, %v372, %v370
    %v374 = vrsqrt.pop %v292
    %v375 = vmul.f32 %v292, %v374
    %vm376 = vcmp.eq.f32.partialorder %v292, inf
    %v377 = vsel %vm376, %v292, %v375
    %vm378 = vcmp.eq.f32.partialorder %v292, 0.0
    %v379 = vand.u32 %v292, 2147483648
    %v380 = vsel %vm378, %v379, %v377
    %v381 = vrsqrt.pop %v293
    %v382 = vmul.f32 %v293, %v381
    %vm383 = vcmp.eq.f32.partialorder %v293, inf
    %v384 = vsel %vm383, %v293, %v382
    %vm385 = vcmp.eq.f32.partialorder %v293, 0.0
    %v386 = vand.u32 %v293, 2147483648
    %v387 = vsel %vm385, %v386, %v384
    %v388 = vrsqrt.pop %v294
    %v389 = vmul.f32 %v294, %v388
    %vm390 = vcmp.eq.f32.partialorder %v294, inf
    %v391 = vsel %vm390, %v294, %v389
    %vm392 = vcmp.eq.f32.partialorder %v294, 0.0
    %v393 = vand.u32 %v294, 2147483648
    %v394 = vsel %vm392, %v393, %v391
    %v395 = vrsqrt.pop %v295
    %v396 = vmul.f32 %v295, %v395
    %vm397 = vcmp.eq.f32.partialorder %v295, inf
    %v398 = vsel %vm397, %v295, %v396
    %vm399 = vcmp.eq.f32.partialorder %v295, 0.0
    %v400 = vand.u32 %v295, 2147483648
    %v401 = vsel %vm399, %v400, %v398
    %v402 = vrsqrt.pop %v296
    %v403 = vmul.f32 %v296, %v402
    %vm404 = vcmp.eq.f32.partialorder %v296, inf
    %v405 = vsel %vm404, %v296, %v403
    %vm406 = vcmp.eq.f32.partialorder %v296, 0.0
    %v407 = vand.u32 %v296, 2147483648
    %v408 = vsel %vm406, %v407, %v405
    %s409 = smul.u32 0, 128
    %v410 = vlaneseq
    %v411 = vshrl.u32 %v410, 7
    %v412 = vadd.s32 %v411, 8
    %v413 = vadd.s32 %v411, 16
    %v414 = vadd.s32 %v411, 24
    %v415 = vadd.s32 %v411, 32
    %v416 = vadd.s32 %v411, 40
    %v417 = vadd.s32 %v411, 48
    %v418 = vadd.s32 %v411, 56
    %v419 = vadd.s32 %v411, 64
    %v420 = vadd.s32 %v411, 72
    %v421 = vadd.s32 %v411, 80
    %v422 = vadd.s32 %v411, 88
    %v423 = vadd.s32 %v411, 96
    %v424 = vadd.s32 %v411, 104
    %v425 = vadd.s32 %v411, 112
    %v426 = vadd.s32 %v411, 120
    %v427 = vstv %s409
    %v428 = vadd.s32 %v427, %v411
    %v429 = vadd.s32 %v427, %v412
    %v430 = vadd.s32 %v427, %v413
    %v431 = vadd.s32 %v427, %v414
    %v432 = vadd.s32 %v427, %v415
    %v433 = vadd.s32 %v427, %v416
    %v434 = vadd.s32 %v427, %v417
    %v435 = vadd.s32 %v427, %v418
    %v436 = vadd.s32 %v427, %v419
    %v437 = vadd.s32 %v427, %v420
    %v438 = vadd.s32 %v427, %v421
    %v439 = vadd.s32 %v427, %v422
    %v440 = vadd.s32 %v427, %v423
    %v441 = vadd.s32 %v427, %v424
    %v442 = vadd.s32 %v427, %v425
    %v443 = vadd.s32 %v427, %v426
    %s444 = smul.u32 0, 128
    %v445 = vlaneseq
    %v446 = vand.u32 %v445, 127
    %v447 = vstv %s444
    %v448 = vadd.s32 %v447, %v446
    %vm449 = vcmp.lt.s32.totalorder %v428, 8
    %vm450 = vcmp.lt.s32.totalorder %v429, 8
    %vm451 = vcmp.lt.s32.totalorder %v430, 8
    %vm452 = vcmp.lt.s32.totalorder %v431, 8
    %vm453 = vcmp.lt.s32.totalorder %v432, 8
    %vm454 = vcmp.lt.s32.totalorder %v433, 8
    %vm455 = vcmp.lt.s32.totalorder %v434, 8
    %vm456 = vcmp.lt.s32.totalorder %v435, 8
    %vm457 = vcmp.lt.s32.totalorder %v436, 8
    %vm458 = vcmp.lt.s32.totalorder %v437, 8
    %vm459 = vcmp.lt.s32.totalorder %v438, 8
    %vm460 = vcmp.lt.s32.totalorder %v439, 8
    %vm461 = vcmp.lt.s32.totalorder %v440, 8
    %vm462 = vcmp.lt.s32.totalorder %v441, 8
    %vm463 = vcmp.lt.s32.totalorder %v442, 8
    %vm464 = vcmp.lt.s32.totalorder %v443, 8
    %vm465 = vcmp.lt.s32.totalorder %v448, 8
    %vm466 = vmand %vm449, %vm465
    %vm467 = vmand %vm450, %vm465
    %vm468 = vmand %vm451, %vm465
    %vm469 = vmand %vm452, %vm465
    %vm470 = vmand %vm453, %vm465
    %vm471 = vmand %vm454, %vm465
    %vm472 = vmand %vm455, %vm465
    %vm473 = vmand %vm456, %vm465
    %vm474 = vmand %vm457, %vm465
    %vm475 = vmand %vm458, %vm465
    %vm476 = vmand %vm459, %vm465
    %vm477 = vmand %vm460, %vm465
    %vm478 = vmand %vm461, %vm465
    %vm479 = vmand %vm462, %vm465
    %vm480 = vmand %vm463, %vm465
    %vm481 = vmand %vm464, %vm465
    %vm482 = vcmp.ne.s32.totalorder %v428, %v448
    %vm483 = vcmp.ne.s32.totalorder %v429, %v448
    %vm484 = vcmp.ne.s32.totalorder %v430, %v448
    %vm485 = vcmp.ne.s32.totalorder %v431, %v448
    %vm486 = vcmp.ne.s32.totalorder %v432, %v448
    %vm487 = vcmp.ne.s32.totalorder %v433, %v448
    %vm488 = vcmp.ne.s32.totalorder %v434, %v448
    %vm489 = vcmp.ne.s32.totalorder %v435, %v448
    %vm490 = vcmp.ne.s32.totalorder %v436, %v448
    %vm491 = vcmp.ne.s32.totalorder %v437, %v448
    %vm492 = vcmp.ne.s32.totalorder %v438, %v448
    %vm493 = vcmp.ne.s32.totalorder %v439, %v448
    %vm494 = vcmp.ne.s32.totalorder %v440, %v448
    %vm495 = vcmp.ne.s32.totalorder %v441, %v448
    %vm496 = vcmp.ne.s32.totalorder %v442, %v448
    %vm497 = vcmp.ne.s32.totalorder %v443, %v448
    %v498 = vld [vmem:[%s2] sm:$0xff]
    %v499 = vld [vmem:[%s2 + $0x8] sm:$0xff]
    %v500 = vld [vmem:[%s2 + $0x10] sm:$0xff]
    %v501 = vld [vmem:[%s2 + $0x18] sm:$0xff]
    %v502 = vld [vmem:[%s2 + $0x20] sm:$0xff]
    %v503 = vld [vmem:[%s2 + $0x28] sm:$0xff]
    %v504 = vld [vmem:[%s2 + $0x30] sm:$0xff]
    %v505 = vld [vmem:[%s2 + $0x38] sm:$0xff]
    %v506 = vld [vmem:[%s2 + $0x40] sm:$0xff]
    %v507 = vld [vmem:[%s2 + $0x48] sm:$0xff]
    %v508 = vld [vmem:[%s2 + $0x50] sm:$0xff]
    %v509 = vld [vmem:[%s2 + $0x58] sm:$0xff]
    %v510 = vld [vmem:[%s2 + $0x60] sm:$0xff]
    %v511 = vld [vmem:[%s2 + $0x68] sm:$0xff]
    %v512 = vld [vmem:[%s2 + $0x70] sm:$0xff]
    %v513 = vld [vmem:[%s2 + $0x78] sm:$0xff]
    %v514 = vld [vmem:[%s3] sm:$0x1]
    %515 = vset.pattern.permute.xlu0 0
    %516 = vperm.xlu0 %515, %v498
    %v517 = vpop.permute.xlu0 %516
    %518 = vset.pattern.permute.xlu0 0
    %519 = vperm.xlu0 %518, %v499
    %v520 = vpop.permute.xlu0 %519
    %521 = vset.pattern.permute.xlu0 0
    %522 = vperm.xlu0 %521, %v500
    %v523 = vpop.permute.xlu0 %522
    %524 = vset.pattern.permute.xlu0 0
    %525 = vperm.xlu0 %524, %v501
    %v526 = vpop.permute.xlu0 %525
    %527 = vset.pattern.permute.xlu0 0
    %528 = vperm.xlu0 %527, %v502
    %v529 = vpop.permute.xlu0 %528
    %530 = vset.pattern.permute.xlu0 0
    %531 = vperm.xlu0 %530, %v503
    %v532 = vpop.permute.xlu0 %531
    %533 = vset.pattern.permute.xlu0 0
    %534 = vperm.xlu0 %533, %v504
    %v535 = vpop.permute.xlu0 %534
    %536 = vset.pattern.permute.xlu0 0
    %537 = vperm.xlu0 %536, %v505
    %v538 = vpop.permute.xlu0 %537
    %539 = vset.pattern.permute.xlu0 0
    %540 = vperm.xlu0 %539, %v506
    %v541 = vpop.permute.xlu0 %540
    %542 = vset.pattern.permute.xlu0 0
    %543 = vperm.xlu0 %542, %v507
    %v544 = vpop.permute.xlu0 %543
    %545 = vset.pattern.permute.xlu0 0
    %546 = vperm.xlu0 %545, %v508
    %v547 = vpop.permute.xlu0 %546
    %548 = vset.pattern.permute.xlu0 0
    %549 = vperm.xlu0 %548, %v509
    %v550 = vpop.permute.xlu0 %549
    %551 = vset.pattern.permute.xlu0 0
    %552 = vperm.xlu0 %551, %v510
    %v553 = vpop.permute.xlu0 %552
    %554 = vset.pattern.permute.xlu0 0
    %555 = vperm.xlu0 %554, %v511
    %v556 = vpop.permute.xlu0 %555
    %557 = vset.pattern.permute.xlu0 0
    %558 = vperm.xlu0 %557, %v512
    %v559 = vpop.permute.xlu0 %558
    %560 = vset.pattern.permute.xlu0 0
    %561 = vperm.xlu0 %560, %v513
    %v562 = vpop.permute.xlu0 %561
    %v563 = vlaneseq
    %v564 = vshrl.u32 %v563, 7
    %v565 = vsub.s32 0, %v564
    %v566 = vrot.slane %v514, %v565
    %vm567 = vcmp.eq.s32.totalorder %v517, %v566
    %vm568 = vcmp.eq.s32.totalorder %v520, %v566
    %vm569 = vcmp.eq.s32.totalorder %v523, %v566
    %vm570 = vcmp.eq.s32.totalorder %v526, %v566
    %vm571 = vcmp.eq.s32.totalorder %v529, %v566
    %vm572 = vcmp.eq.s32.totalorder %v532, %v566
    %vm573 = vcmp.eq.s32.totalorder %v535, %v566
    %vm574 = vcmp.eq.s32.totalorder %v538, %v566
    %vm575 = vcmp.eq.s32.totalorder %v541, %v566
    %vm576 = vcmp.eq.s32.totalorder %v544, %v566
    %vm577 = vcmp.eq.s32.totalorder %v547, %v566
    %vm578 = vcmp.eq.s32.totalorder %v550, %v566
    %vm579 = vcmp.eq.s32.totalorder %v553, %v566
    %vm580 = vcmp.eq.s32.totalorder %v556, %v566
    %vm581 = vcmp.eq.s32.totalorder %v559, %v566
    %vm582 = vcmp.eq.s32.totalorder %v562, %v566
    %vm583 = vmand %vm567, %vm482
    %vm584 = vmand %vm568, %vm483
    %vm585 = vmand %vm569, %vm484
    %vm586 = vmand %vm570, %vm485
    %vm587 = vmand %vm571, %vm486
    %vm588 = vmand %vm572, %vm487
    %vm589 = vmand %vm573, %vm488
    %vm590 = vmand %vm574, %vm489
    %vm591 = vmand %vm575, %vm490
    %vm592 = vmand %vm576, %vm491
    %vm593 = vmand %vm577, %vm492
    %vm594 = vmand %vm578, %vm493
    %vm595 = vmand %vm579, %vm494
    %vm596 = vmand %vm580, %vm495
    %vm597 = vmand %vm581, %vm496
    %vm598 = vmand %vm582, %vm497
    %vm599 = vmand %vm583, %vm466
    %vm600 = vmand %vm584, %vm467
    %vm601 = vmand %vm585, %vm468
    %vm602 = vmand %vm586, %vm469
    %vm603 = vmand %vm587, %vm470
    %vm604 = vmand %vm588, %vm471
    %vm605 = vmand %vm589, %vm472
    %vm606 = vmand %vm590, %vm473
    %vm607 = vmand %vm591, %vm474
    %vm608 = vmand %vm592, %vm475
    %vm609 = vmand %vm593, %vm476
    %vm610 = vmand %vm594, %vm477
    %vm611 = vmand %vm595, %vm478
    %vm612 = vmand %vm596, %vm479
    %vm613 = vmand %vm597, %vm480
    %vm614 = vmand %vm598, %vm481
    %v615 = vmax.f32 %v303, 0.0
    %v616 = vmax.f32 %v310, 0.0
    %v617 = vmax.f32 %v317, 0.0
    %v618 = vmax.f32 %v324, 0.0
    %v619 = vmax.f32 %v331, 0.0
    %v620 = vmax.f32 %v338, 0.0
    %v621 = vmax.f32 %v345, 0.0
    %v622 = vmax.f32 %v352, 0.0
    %v623 = vmax.f32 %v359, 0.0
    %v624 = vmax.f32 %v366, 0.0
    %v625 = vmax.f32 %v373, 0.0
    %v626 = vmax.f32 %v380, 0.0
    %v627 = vmax.f32 %v387, 0.0
    %v628 = vmax.f32 %v394, 0.0
    %v629 = vmax.f32 %v401, 0.0
    %v630 = vmax.f32 %v408, 0.0
    %v631 = vsel %vm599, %v615, 0.0
    %v632 = vsel %vm600, %v616, 0.0
    %v633 = vsel %vm601, %v617, 0.0
    %v634 = vsel %vm602, %v618, 0.0
    %v635 = vsel %vm603, %v619, 0.0
    %v636 = vsel %vm604, %v620, 0.0
    %v637 = vsel %vm605, %v621, 0.0
    %v638 = vsel %vm606, %v622, 0.0
    %v639 = vsel %vm607, %v623, 0.0
    %v640 = vsel %vm608, %v624, 0.0
    %v641 = vsel %vm609, %v625, 0.0
    %v642 = vsel %vm610, %v626, 0.0
    %v643 = vsel %vm611, %v627, 0.0
    %v644 = vsel %vm612, %v628, 0.0
    %v645 = vsel %vm613, %v629, 0.0
    %v646 = vsel %vm614, %v630, 0.0
    %vm647 = vmxor %vm567, 1
    %vm648 = vmxor %vm568, 1
    %vm649 = vmxor %vm569, 1
    %vm650 = vmxor %vm570, 1
    %vm651 = vmxor %vm571, 1
    %vm652 = vmxor %vm572, 1
    %vm653 = vmxor %vm573, 1
    %vm654 = vmxor %vm574, 1
    %vm655 = vmxor %vm575, 1
    %vm656 = vmxor %vm576, 1
    %vm657 = vmxor %vm577, 1
    %vm658 = vmxor %vm578, 1
    %vm659 = vmxor %vm579, 1
    %vm660 = vmxor %vm580, 1
    %vm661 = vmxor %vm581, 1
    %vm662 = vmxor %vm582, 1
    %vm663 = vmand %vm647, %vm466
    %vm664 = vmand %vm648, %vm467
    %vm665 = vmand %vm649, %vm468
    %vm666 = vmand %vm650, %vm469
    %vm667 = vmand %vm651, %vm470
    %vm668 = vmand %vm652, %vm471
    %vm669 = vmand %vm653, %vm472
    %vm670 = vmand %vm654, %vm473
    %vm671 = vmand %vm655, %vm474
    %vm672 = vmand %vm656, %vm475
    %vm673 = vmand %vm657, %vm476
    %vm674 = vmand %vm658, %vm477
    %vm675 = vmand %vm659, %vm478
    %vm676 = vmand %vm660, %vm479
    %vm677 = vmand %vm661, %vm480
    %vm678 = vmand %vm662, %vm481
    %v679 = vsub.f32 0.5, %v303
    %v680 = vsub.f32 0.5, %v310
    %v681 = vsub.f32 0.5, %v317
    %v682 = vsub.f32 0.5, %v324
    %v683 = vsub.f32 0.5, %v331
    %v684 = vsub.f32 0.5, %v338
    %v685 = vsub.f32 0.5, %v345
    %v686 = vsub.f32 0.5, %v352
    %v687 = vsub.f32 0.5, %v359
    %v688 = vsub.f32 0.5, %v366
    %v689 = vsub.f32 0.5, %v373
    %v690 = vsub.f32 0.5, %v380
    %v691 = vsub.f32 0.5, %v387
    %v692 = vsub.f32 0.5, %v394
    %v693 = vsub.f32 0.5, %v401
    %v694 = vsub.f32 0.5, %v408
    %v695 = vmax.f32 %v679, 0.0
    %v696 = vmax.f32 %v680, 0.0
    %v697 = vmax.f32 %v681, 0.0
    %v698 = vmax.f32 %v682, 0.0
    %v699 = vmax.f32 %v683, 0.0
    %v700 = vmax.f32 %v684, 0.0
    %v701 = vmax.f32 %v685, 0.0
    %v702 = vmax.f32 %v686, 0.0
    %v703 = vmax.f32 %v687, 0.0
    %v704 = vmax.f32 %v688, 0.0
    %v705 = vmax.f32 %v689, 0.0
    %v706 = vmax.f32 %v690, 0.0
    %v707 = vmax.f32 %v691, 0.0
    %v708 = vmax.f32 %v692, 0.0
    %v709 = vmax.f32 %v693, 0.0
    %v710 = vmax.f32 %v694, 0.0
    %v711 = vsel %vm663, %v695, 0.0
    %v712 = vsel %vm664, %v696, 0.0
    %v713 = vsel %vm665, %v697, 0.0
    %v714 = vsel %vm666, %v698, 0.0
    %v715 = vsel %vm667, %v699, 0.0
    %v716 = vsel %vm668, %v700, 0.0
    %v717 = vsel %vm669, %v701, 0.0
    %v718 = vsel %vm670, %v702, 0.0
    %v719 = vsel %vm671, %v703, 0.0
    %v720 = vsel %vm672, %v704, 0.0
    %v721 = vsel %vm673, %v705, 0.0
    %v722 = vsel %vm674, %v706, 0.0
    %v723 = vsel %vm675, %v707, 0.0
    %v724 = vsel %vm676, %v708, 0.0
    %v725 = vsel %vm677, %v709, 0.0
    %v726 = vsel %vm678, %v710, 0.0
    %v727 = vadd.f32 %v631, %v632
    %v728 = vadd.f32 %v727, %v633
    %v729 = vadd.f32 %v728, %v634
    %v730 = vadd.f32 %v729, %v635
    %v731 = vadd.f32 %v730, %v636
    %v732 = vadd.f32 %v731, %v637
    %v733 = vadd.f32 %v732, %v638
    %v734 = vadd.f32 %v733, %v639
    %v735 = vadd.f32 %v734, %v640
    %v736 = vadd.f32 %v735, %v641
    %v737 = vadd.f32 %v736, %v642
    %v738 = vadd.f32 %v737, %v643
    %v739 = vadd.f32 %v738, %v644
    %v740 = vadd.f32 %v739, %v645
    %v741 = vadd.f32 %v740, %v646
    %742 = vadd.xlane.f32.xlu0 %v741
    %v743 = vpop.xlane.xlu0 %742
    %v744 = vrot.slane %v743, 4
    %v745 = vadd.f32 %v743, %v744
    %v746 = vrot.slane %v745, 2
    %v747 = vadd.f32 %v745, %v746
    %v748 = vrot.slane %v747, 1
    %v749 = vadd.f32 %v747, %v748
    %s750 = vtos %v749
    %v751 = vadd.f32 %v711, %v712
    %v752 = vadd.f32 %v751, %v713
    %v753 = vadd.f32 %v752, %v714
    %v754 = vadd.f32 %v753, %v715
    %v755 = vadd.f32 %v754, %v716
    %v756 = vadd.f32 %v755, %v717
    %v757 = vadd.f32 %v756, %v718
    %v758 = vadd.f32 %v757, %v719
    %v759 = vadd.f32 %v758, %v720
    %v760 = vadd.f32 %v759, %v721
    %v761 = vadd.f32 %v760, %v722
    %v762 = vadd.f32 %v761, %v723
    %v763 = vadd.f32 %v762, %v724
    %v764 = vadd.f32 %v763, %v725
    %v765 = vadd.f32 %v764, %v726
    %766 = vadd.xlane.f32.xlu0 %v765
    %v767 = vpop.xlane.xlu0 %766
    %v768 = vrot.slane %v767, 4
    %v769 = vadd.f32 %v767, %v768
    %v770 = vrot.slane %v769, 2
    %v771 = vadd.f32 %v769, %v770
    %v772 = vrot.slane %v771, 1
    %v773 = vadd.f32 %v771, %v772
    %s774 = vtos %v773
    %vm775 = vcmp.gt.f32.partialorder %v631, 0.0
    %vm776 = vcmp.gt.f32.partialorder %v632, 0.0
    %vm777 = vcmp.gt.f32.partialorder %v633, 0.0
    %vm778 = vcmp.gt.f32.partialorder %v634, 0.0
    %vm779 = vcmp.gt.f32.partialorder %v635, 0.0
    %vm780 = vcmp.gt.f32.partialorder %v636, 0.0
    %vm781 = vcmp.gt.f32.partialorder %v637, 0.0
    %vm782 = vcmp.gt.f32.partialorder %v638, 0.0
    %vm783 = vcmp.gt.f32.partialorder %v639, 0.0
    %vm784 = vcmp.gt.f32.partialorder %v640, 0.0
    %vm785 = vcmp.gt.f32.partialorder %v641, 0.0
    %vm786 = vcmp.gt.f32.partialorder %v642, 0.0
    %vm787 = vcmp.gt.f32.partialorder %v643, 0.0
    %vm788 = vcmp.gt.f32.partialorder %v644, 0.0
    %vm789 = vcmp.gt.f32.partialorder %v645, 0.0
    %vm790 = vcmp.gt.f32.partialorder %v646, 0.0
    %v791 = vsel %vm775, 1, 0
    %v792 = vsel %vm776, 1, 0
    %v793 = vsel %vm777, 1, 0
    %v794 = vsel %vm778, 1, 0
    %v795 = vsel %vm779, 1, 0
    %v796 = vsel %vm780, 1, 0
    %v797 = vsel %vm781, 1, 0
    %v798 = vsel %vm782, 1, 0
    %v799 = vsel %vm783, 1, 0
    %v800 = vsel %vm784, 1, 0
    %v801 = vsel %vm785, 1, 0
    %v802 = vsel %vm786, 1, 0
    %v803 = vsel %vm787, 1, 0
    %v804 = vsel %vm788, 1, 0
    %v805 = vsel %vm789, 1, 0
    %v806 = vsel %vm790, 1, 0
    %v807 = vcvt.s32.f32 %v791
    %v808 = vcvt.s32.f32 %v792
    %v809 = vcvt.s32.f32 %v793
    %v810 = vcvt.s32.f32 %v794
    %v811 = vcvt.s32.f32 %v795
    %v812 = vcvt.s32.f32 %v796
    %v813 = vcvt.s32.f32 %v797
    %v814 = vcvt.s32.f32 %v798
    %v815 = vcvt.s32.f32 %v799
    %v816 = vcvt.s32.f32 %v800
    %v817 = vcvt.s32.f32 %v801
    %v818 = vcvt.s32.f32 %v802
    %v819 = vcvt.s32.f32 %v803
    %v820 = vcvt.s32.f32 %v804
    %v821 = vcvt.s32.f32 %v805
    %v822 = vcvt.s32.f32 %v806
    %v823 = vadd.f32 %v807, %v808
    %v824 = vadd.f32 %v823, %v809
    %v825 = vadd.f32 %v824, %v810
    %v826 = vadd.f32 %v825, %v811
    %v827 = vadd.f32 %v826, %v812
    %v828 = vadd.f32 %v827, %v813
    %v829 = vadd.f32 %v828, %v814
    %v830 = vadd.f32 %v829, %v815
    %v831 = vadd.f32 %v830, %v816
    %v832 = vadd.f32 %v831, %v817
    %v833 = vadd.f32 %v832, %v818
    %v834 = vadd.f32 %v833, %v819
    %v835 = vadd.f32 %v834, %v820
    %v836 = vadd.f32 %v835, %v821
    %v837 = vadd.f32 %v836, %v822
    %838 = vadd.xlane.f32.xlu0 %v837
    %v839 = vpop.xlane.xlu0 %838
    %v840 = vrot.slane %v839, 4
    %v841 = vadd.f32 %v839, %v840
    %v842 = vrot.slane %v841, 2
    %v843 = vadd.f32 %v841, %v842
    %v844 = vrot.slane %v843, 1
    %v845 = vadd.f32 %v843, %v844
    %s846 = vtos %v845
    %vm847 = vcmp.gt.f32.partialorder %v711, 0.0
    %vm848 = vcmp.gt.f32.partialorder %v712, 0.0
    %vm849 = vcmp.gt.f32.partialorder %v713, 0.0
    %vm850 = vcmp.gt.f32.partialorder %v714, 0.0
    %vm851 = vcmp.gt.f32.partialorder %v715, 0.0
    %vm852 = vcmp.gt.f32.partialorder %v716, 0.0
    %vm853 = vcmp.gt.f32.partialorder %v717, 0.0
    %vm854 = vcmp.gt.f32.partialorder %v718, 0.0
    %vm855 = vcmp.gt.f32.partialorder %v719, 0.0
    %vm856 = vcmp.gt.f32.partialorder %v720, 0.0
    %vm857 = vcmp.gt.f32.partialorder %v721, 0.0
    %vm858 = vcmp.gt.f32.partialorder %v722, 0.0
    %vm859 = vcmp.gt.f32.partialorder %v723, 0.0
    %vm860 = vcmp.gt.f32.partialorder %v724, 0.0
    %vm861 = vcmp.gt.f32.partialorder %v725, 0.0
    %vm862 = vcmp.gt.f32.partialorder %v726, 0.0
    %v863 = vsel %vm847, 1, 0
    %v864 = vsel %vm848, 1, 0
    %v865 = vsel %vm849, 1, 0
    %v866 = vsel %vm850, 1, 0
    %v867 = vsel %vm851, 1, 0
    %v868 = vsel %vm852, 1, 0
    %v869 = vsel %vm853, 1, 0
    %v870 = vsel %vm854, 1, 0
    %v871 = vsel %vm855, 1, 0
    %v872 = vsel %vm856, 1, 0
    %v873 = vsel %vm857, 1, 0
    %v874 = vsel %vm858, 1, 0
    %v875 = vsel %vm859, 1, 0
    %v876 = vsel %vm860, 1, 0
    %v877 = vsel %vm861, 1, 0
    %v878 = vsel %vm862, 1, 0
    %v879 = vcvt.s32.f32 %v863
    %v880 = vcvt.s32.f32 %v864
    %v881 = vcvt.s32.f32 %v865
    %v882 = vcvt.s32.f32 %v866
    %v883 = vcvt.s32.f32 %v867
    %v884 = vcvt.s32.f32 %v868
    %v885 = vcvt.s32.f32 %v869
    %v886 = vcvt.s32.f32 %v870
    %v887 = vcvt.s32.f32 %v871
    %v888 = vcvt.s32.f32 %v872
    %v889 = vcvt.s32.f32 %v873
    %v890 = vcvt.s32.f32 %v874
    %v891 = vcvt.s32.f32 %v875
    %v892 = vcvt.s32.f32 %v876
    %v893 = vcvt.s32.f32 %v877
    %v894 = vcvt.s32.f32 %v878
    %v895 = vadd.f32 %v879, %v880
    %v896 = vadd.f32 %v895, %v881
    %v897 = vadd.f32 %v896, %v882
    %v898 = vadd.f32 %v897, %v883
    %v899 = vadd.f32 %v898, %v884
    %v900 = vadd.f32 %v899, %v885
    %v901 = vadd.f32 %v900, %v886
    %v902 = vadd.f32 %v901, %v887
    %v903 = vadd.f32 %v902, %v888
    %v904 = vadd.f32 %v903, %v889
    %v905 = vadd.f32 %v904, %v890
    %v906 = vadd.f32 %v905, %v891
    %v907 = vadd.f32 %v906, %v892
    %v908 = vadd.f32 %v907, %v893
    %v909 = vadd.f32 %v908, %v894
    %910 = vadd.xlane.f32.xlu0 %v909
    %v911 = vpop.xlane.xlu0 %910
    %v912 = vrot.slane %v911, 4
    %v913 = vadd.f32 %v911, %v912
    %v914 = vrot.slane %v913, 2
    %v915 = vadd.f32 %v913, %v914
    %v916 = vrot.slane %v915, 1
    %v917 = vadd.f32 %v915, %v916
    %s918 = vtos %v917
    %vm919 = vcmp.eq.s32.totalorder %v411, 0
    %vm920 = vcmp.eq.s32.totalorder %v446, 0
    %vm921 = vmand %vm919, %vm920
    %v922 = vstv %s750
    %v923 = vsel %vm921, %v922, 0.0
    %vm924 = vcmp.eq.s32.totalorder %v446, 1
    %vm925 = vmand %vm919, %vm924
    %v926 = vstv %s774
    %v927 = vsel %vm925, %v926, 0.0
    %v928 = vadd.f32 %v923, %v927
    %vm929 = vcmp.eq.s32.totalorder %v446, 2
    %vm930 = vmand %vm919, %vm929
    %v931 = vstv %s846
    %v932 = vsel %vm930, %v931, 0.0
    %v933 = vadd.f32 %v928, %v932
    %vm934 = vcmp.eq.s32.totalorder %v446, 3
    %vm935 = vmand %vm919, %vm934
    %v936 = vstv %s918
    %v937 = vsel %vm935, %v936, 0.0
    %v938 = vadd.f32 %v933, %v937
    %v939 = vld [vmem:[#allocation2] sm:$0xff]
    %v940 = vadd.f32 %v939, %v938
    %941 = vst [vmem:[#allocation2] sm:$0xff] %v940
    // Predicated region
    $region22: #{tpu_custom_call.1} parent=1 // pred_check
      _
    $region23: #{tpu_custom_call.1} parent=1 // pred_check_branch
      %943 = sbr.rel (0) target = $region25
    $region24: #{tpu_custom_call.1} parent=1 // pred_region
      %s945 = ssub.s32 128, 128
      %946 = vsyncadd [#allocation3], %s945
      %s948 = sshll.u32 [#allocation2], 4
      %s949 = int_to_ptr.vmem [resolvable:$true] %s948
      %951 = dma.vmem_to_hbm [thread:$0]  %s949, 128, %s4, [#allocation3]
    $region25: #{tpu_custom_call.1} parent=1 // pred_fallthru
      _
    // Predicated region
    $region26: #{tpu_custom_call.1} parent=1 // pred_check
      _
    $region27: #{tpu_custom_call.1} parent=1 // pred_check_branch
      %953 = sbr.rel (0) target = $region29
    $region28: #{tpu_custom_call.1} parent=1 // pred_region
      %954 = dma.done [#allocation3], 128
    $region29: #{tpu_custom_call.1} parent=1 // pred_fallthru
      _
    %955 = vsyncpa [#allocation3], 1

</llo_original>
